<compile_context>
chip_gen: v6e
topology: v6e:2x2x1
jax: 0.10.0
libtpu: 0.0.40
codegen_flags: <defaults>
</compile_context>

<pallas_src>
import functools

import jax
import jax.numpy as jnp
from jax import lax
from jax.experimental import pallas as pl
from jax.experimental.pallas import tpu as pltpu


def _nt_xent_kernel(z_ref, o_ref, acc_ref, *,
                    batch_size: int, temperature: float, tm: int, g: int):
    """One grid step: rows [i*tm, (i+1)*tm) of the normalized (N, Dp) matrix
    against all N rows.  Accumulates per-row (lse - pos) in VMEM scratch."""
    i = pl.program_id(0)
    N = 2 * batch_size
    nb = batch_size // tm            # block offset of the paired (positive) rows
    inv_t = 1.0 / temperature

    @pl.when(i == 0)
    def _init():
        acc_ref[...] = jnp.zeros_like(acc_ref)

    # Row block for this step, 1/temperature folded in (O(TM*D), not O(TM*N)).
    row_start = pl.multiple_of(i * tm, tm)
    zb = z_ref[pl.ds(row_start, tm), :] * jnp.asarray(inv_t, z_ref.dtype)     # [TM, Dp]

    # Paired rows holding the positives: block (i + nb) mod g, without modulo.
    pj = i + nb
    pj = jnp.where(pj >= g, pj - g, pj)
    pos_start = pl.multiple_of(pj * tm, tm)
    zp = z_ref[pl.ds(pos_start, tm), :]                                       # [TM, Dp]

    # Similarity slab on the MXU: contract the feature dims of both operands
    # directly (no z.T / XLU transpose).
    sim = lax.dot_general(
        zb, z_ref[...],
        dimension_numbers=(((1,), (1,)), ((), ())),
        preferred_element_type=jnp.float32,
    )                                                                         # [TM, N]

    # Exclude only the diagonal (self-similarity) from the logsumexp; the mask
    # is tile-sized (TM, N) and built from the global row offset -- no modulo.
    row_g = i * tm + lax.broadcasted_iota(jnp.int32, (tm, N), 0)
    col = lax.broadcasted_iota(jnp.int32, (tm, N), 1)
    sim_nd = jnp.where(row_g == col, jnp.float32(-1e30), sim)

    m = jnp.max(sim_nd, axis=-1, keepdims=True)                               # [TM, 1]
    lse = m + jnp.log(jnp.sum(jnp.exp(sim_nd - m), axis=-1, keepdims=True))   # [TM, 1]

    # Positive logit sim[r, (r+B) mod N]: row-wise dot with the paired rows
    # (1/temperature already folded into zb).
    pos = jnp.sum(zb.astype(jnp.float32) * zp.astype(jnp.float32),
                  axis=-1, keepdims=True)                                     # [TM, 1]

    acc_ref[...] += lse - pos

    @pl.when(i == g - 1)
    def _finalize():
        total = jnp.sum(acc_ref[...], axis=0, keepdims=True)                  # [1, 1]
        o_ref[...] = total * jnp.float32(1.0 / N)


def _pick_row_tile(batch_size: int) -> int:
    for cand in (256, 128, 64, 32, 16, 8):
        if batch_size % cand == 0:
            return cand
    raise ValueError(
        "NT-Xent Pallas kernel expects batch_size to be a multiple of 8.")


def nt_xent_loss(z_i, z_j, temperature: float):
    assert z_i.ndim == 2 and z_i.shape == z_j.shape
    B, D = z_i.shape
    N = 2 * B
    tm = _pick_row_tile(B)
    g = N // tm                 # number of row blocks (>= 2 since tm <= B)

    # Pad feature dim to a lane-aligned multiple of 128 (zero padding changes
    # neither the dot products nor the norms -> exact for cosine similarity).
    Dp = max(128, ((D + 127) // 128) * 128)

    z = jnp.concatenate([z_i, z_j], axis=0)                                   # [N, D]
    if Dp != D:
        z = jnp.pad(z, ((0, 0), (0, Dp - D)))

    # Pre-normalize rows once in the wrapper (O(N*D) instead of O(N^2) work
    # inside the kernel).  Per-row clamp mirrors the reference eps clamp.
    zf = z.astype(jnp.float32)
    norm = jnp.sqrt(jnp.sum(zf * zf, axis=-1, keepdims=True))
    zn = (zf / jnp.maximum(norm, 1e-8)).astype(z_i.dtype)                     # [N, Dp]

    kernel = functools.partial(
        _nt_xent_kernel, batch_size=B, temperature=float(temperature),
        tm=tm, g=g)

    grid_spec = pltpu.PrefetchScalarGridSpec(
        num_scalar_prefetch=0,
        grid=(g,),
        in_specs=[
            # Full normalized z kept VMEM-resident (constant block index).
            pl.BlockSpec((N, Dp), lambda i: (0, 0)),
        ],
        out_specs=pl.BlockSpec((1, 1), lambda i: (0, 0)),
        scratch_shapes=[pltpu.VMEM((tm, 1), jnp.float32)],
    )
    out = pl.pallas_call(
        kernel,
        out_shape=jax.ShapeDtypeStruct((1, 1), jnp.float32),
        grid_spec=grid_spec,
        compiler_params=pltpu.CompilerParams(
            dimension_semantics=("arbitrary",)),   # accumulator across row blocks
    )(zn)
    # TODO(synk): for very large N (resident z > VMEM), also tile the column
    # axis with an online (flash-style) logsumexp and emit per-block partials
    # so the row axis can be marked "parallel" for v7x's two TensorCores.
    return out[0, 0]


def _nt_xent_ref(z_i, z_j, temperature):
    # Pure-JAX reference mirroring the PyTorch module (for sanity check).
    B = z_i.shape[0]
    N = 2 * B
    z = jnp.concatenate([z_i, z_j], axis=0).astype(jnp.float32)
    dots = z @ z.T
    norms = jnp.linalg.norm(z, axis=-1, keepdims=True)
    sim = dots / jnp.maximum(norms * norms.T, 1e-8) / temperature
    idx = jnp.arange(N)
    pos = sim[idx, (idx + B) % N]
    sim_no_diag = jnp.where(jnp.eye(N, dtype=bool), -jnp.inf, sim)
    lse = jax.scipy.special.logsumexp(sim_no_diag, axis=-1)
    return jnp.sum(lse - pos) / N


if __name__ == "__main__":
    batch_size = 8
    hidden = 32
    temperature = 0.5

    key = jax.random.PRNGKey(0)
    k1, k2 = jax.random.split(key)
    z_i = jax.random.normal(k1, (batch_size, hidden), dtype=jnp.float32)
    z_j = jax.random.normal(k2, (batch_size, hidden), dtype=jnp.float32)

    loss = jax.block_until_ready(nt_xent_loss(z_i, z_j, temperature))
    ref = jax.block_until_ready(_nt_xent_ref(z_i, z_j, temperature))

    assert jnp.allclose(loss, ref, rtol=1e-5, atol=1e-5), (loss, ref)
    print("KERNEL_OK")
</pallas_src>

<mosaic_0001>
module attributes {stable_mosaic.version = 11 : i64} {
  func.func @_nt_xent_kernel(%arg0: i32, %arg1: memref<16x128xf32, #tpu.memory_space<vmem>>, %arg2: memref<1x1xf32, #tpu.memory_space<vmem>>, %arg3: memref<8x1xf32, #tpu.memory_space<vmem>>) attributes {dimension_semantics = [#tpu.dimension_semantics<arbitrary>], iteration_bounds = array<i64: 2>, scalar_prefetch = 0 : i64, scratch_operands = 1 : i64, tpu.core_type = #tpu.core_type<tc>, window_params = [{pipeline_mode = #tpu.pipeline_mode<synchronous>, transform_indices = @transform_0, window_bounds = array<i64: 16, 128>}, {pipeline_mode = #tpu.pipeline_mode<synchronous>, transform_indices = @transform_1, window_bounds = array<i64: 1, 1>}]} {
    %c0_i32 = arith.constant 0 : i32
    %0 = arith.cmpi eq, %arg0, %c0_i32 : i32
    %1 = arith.extui %0 : i1 to i32
    %c0_i32_0 = arith.constant 0 : i32
    %2 = arith.cmpi ne, %1, %c0_i32_0 : i32
    scf.if %2 {
      %cst_18 = arith.constant 0.000000e+00 : f32
      %46 = vector.broadcast %cst_18 : f32 to vector<8x1xf32>
      %c0_19 = arith.constant 0 : index
      %c0_20 = arith.constant 0 : index
      %47 = vector.load %arg3[%c0_19, %c0_20] : memref<8x1xf32, #tpu.memory_space<vmem>>, vector<8x1xf32>
      tpu.vector_store %arg3[%c0_19, %c0_20], %46 {strides = array<i32>} : memref<8x1xf32, #tpu.memory_space<vmem>>, vector<8x1xf32>,
    } else {
    }
    %c8_i32 = arith.constant 8 : i32
    %3 = arith.muli %arg0, %c8_i32 : i32
    %4 = tpu.assume_multiple %3, 8 : i32
    %5 = arith.index_cast %4 : i32 to index
    %c0 = arith.constant 0 : index
    %6 = vector.load %arg1[%5, %c0] : memref<16x128xf32, #tpu.memory_space<vmem>>, vector<8x128xf32>
    %cst = arith.constant 2.000000e+00 : f32
    %7 = vector.broadcast %cst : f32 to vector<8x128xf32>
    %8 = arith.mulf %6, %7 : vector<8x128xf32>
    %c1_i32 = arith.constant 1 : i32
    %9 = arith.addi %arg0, %c1_i32 : i32
    %c2_i32 = arith.constant 2 : i32
    %10 = arith.cmpi sge, %9, %c2_i32 : i32
    %c2_i32_1 = arith.constant 2 : i32
    %11 = arith.subi %9, %c2_i32_1 : i32
    %12 = arith.select %10, %11, %9 : i32
    %c8_i32_2 = arith.constant 8 : i32
    %13 = arith.muli %12, %c8_i32_2 : i32
    %14 = tpu.assume_multiple %13, 8 : i32
    %15 = arith.index_cast %14 : i32 to index
    %c0_3 = arith.constant 0 : index
    %16 = vector.load %arg1[%15, %c0_3] : memref<16x128xf32, #tpu.memory_space<vmem>>, vector<8x128xf32>
    %c0_4 = arith.constant 0 : index
    %c0_5 = arith.constant 0 : index
    %17 = vector.load %arg1[%c0_4, %c0_5] : memref<16x128xf32, #tpu.memory_space<vmem>>, vector<16x128xf32>
    %cst_6 = arith.constant dense<0.000000e+00> : vector<8x16xf32>
    %18 = tpu.matmul %8, %17, %cst_6 {dimension_numbers = #tpu.dot_dimension_numbers<[1], [1], [0], [0], [0, 0, 1, 0], [], []>} : vector<8x128xf32>, vector<16x128xf32>, vector<8x16xf32> -> vector<8x16xf32>
    %c8_i32_7 = arith.constant 8 : i32
    %19 = arith.muli %arg0, %c8_i32_7 : i32
    %20 = tpu.iota {dimensions = array<i32: 0>} : vector<8x16xi32>
    %21 = vector.broadcast %19 : i32 to vector<8x16xi32>
    %22 = arith.addi %21, %20 : vector<8x16xi32>
    %23 = tpu.iota {dimensions = array<i32: 1>} : vector<8x16xi32>
    %24 = arith.cmpi eq, %22, %23 : vector<8x16xi32>
    %cst_8 = arith.constant -1.000000e+30 : f32
    %25 = vector.broadcast %cst_8 : f32 to vector<8x16xf32>
    %26 = arith.select %24, %25, %18 : vector<8x16xi1>, vector<8x16xf32>
    %cst_9 = arith.constant dense<0xFF800000> : vector<8xf32>
    %27 = vector.multi_reduction <maximumf>, %26, %cst_9 [1] : vector<8x16xf32> to vector<8xf32>
    %28 = vector.shape_cast %27 : vector<8xf32> to vector<8x1xf32>
    %29 = vector.broadcast %28 : vector<8x1xf32> to vector<8x16xf32>
    %30 = arith.subf %26, %29 : vector<8x16xf32>
    %31 = math.exp %30 : vector<8x16xf32>
    %cst_10 = arith.constant dense<0.000000e+00> : vector<8xf32>
    %32 = vector.multi_reduction <add>, %31, %cst_10 [1] : vector<8x16xf32> to vector<8xf32>
    %33 = vector.shape_cast %32 : vector<8xf32> to vector<8x1xf32>
    %34 = math.log %33 : vector<8x1xf32>
    %35 = arith.addf %28, %34 : vector<8x1xf32>
    %36 = arith.mulf %8, %16 : vector<8x128xf32>
    %cst_11 = arith.constant dense<0.000000e+00> : vector<8xf32>
    %37 = vector.multi_reduction <add>, %36, %cst_11 [1] : vector<8x128xf32> to vector<8xf32>
    %38 = vector.shape_cast %37 : vector<8xf32> to vector<8x1xf32>
    %c0_12 = arith.constant 0 : index
    %c0_13 = arith.constant 0 : index
    %39 = vector.load %arg3[%c0_12, %c0_13] : memref<8x1xf32, #tpu.memory_space<vmem>>, vector<8x1xf32>
    %40 = arith.subf %35, %38 : vector<8x1xf32>
    %41 = arith.addf %39, %40 : vector<8x1xf32>
    %c0_14 = arith.constant 0 : index
    %c0_15 = arith.constant 0 : index
    %42 = vector.load %arg3[%c0_14, %c0_15] : memref<8x1xf32, #tpu.memory_space<vmem>>, vector<8x1xf32>
    tpu.vector_store %arg3[%c0_14, %c0_15], %41 {strides = array<i32>} : memref<8x1xf32, #tpu.memory_space<vmem>>, vector<8x1xf32>,
    %c1_i32_16 = arith.constant 1 : i32
    %43 = arith.cmpi eq, %arg0, %c1_i32_16 : i32
    %44 = arith.extui %43 : i1 to i32
    %c0_i32_17 = arith.constant 0 : i32
    %45 = arith.cmpi ne, %44, %c0_i32_17 : i32
    scf.if %45 {
      %c0_18 = arith.constant 0 : index
      %c0_19 = arith.constant 0 : index
      %46 = vector.load %arg3[%c0_18, %c0_19] : memref<8x1xf32, #tpu.memory_space<vmem>>, vector<8x1xf32>
      %cst_20 = arith.constant dense<0.000000e+00> : vector<1xf32>
      %47 = vector.multi_reduction <add>, %46, %cst_20 [0] : vector<8x1xf32> to vector<1xf32>
      %48 = vector.shape_cast %47 : vector<1xf32> to vector<1x1xf32>
      %cst_21 = arith.constant 6.250000e-02 : f32
      %49 = vector.broadcast %cst_21 : f32 to vector<1x1xf32>
      %50 = arith.mulf %48, %49 : vector<1x1xf32>
      %c0_22 = arith.constant 0 : index
      %c0_23 = arith.constant 0 : index
      %51 = vector.load %arg2[%c0_22, %c0_23] : memref<1x1xf32, #tpu.memory_space<vmem>>, vector<1x1xf32>
      tpu.vector_store %arg2[%c0_22, %c0_23], %50 {strides = array<i32>} : memref<1x1xf32, #tpu.memory_space<vmem>>, vector<1x1xf32>,
    } else {
    }
    return
  }
  func.func @transform_0(%arg0: i32) -> (i32, i32) {
    %c0_i32 = arith.constant 0 : i32
    %c0_i32_0 = arith.constant 0 : i32
    %c0_i32_1 = arith.constant 0 : i32
    return %c0_i32, %c0_i32_0 : i32, i32
  }
  func.func @transform_1(%arg0: i32) -> (i32, i32) {
    %c0_i32 = arith.constant 0 : i32
    %c0_i32_0 = arith.constant 0 : i32
    %c0_i32_1 = arith.constant 0 : i32
    return %c0_i32, %c0_i32_0 : i32, i32
  }
}

</mosaic_0001>

<llo_original>
// kernel: tpu_custom_call.1
$region0: #{tpu_custom_call.1}
  #allocation0 [shape = 'u32[]', space=smem, size = 0x4, offset = 0x4, fixed_abs, tag = 'smem constant byte address 0x4 - core index']
  #allocation1 [shape = 'u32[144,128]{1,0:T(1,128)}', space=vmem, size = 0x12000, scoped, tag = 'internal scratch']
  #allocation2 [shape = 'f32[8,1]{1,0:T(8,128)}', space=vmem, size = 0x1000, scoped, tag = 'scratch operand']
  %s0 = inlined_call_operand.hbm [shape: f32[16,128], index: 0, kind: input, shape index: {}]
  %s1 = inlined_call_operand.hbm [shape: f32[1,1], index: 1, kind: output, shape index: {}]
  %s2 = sld [smem:[#allocation0]]
  $region49: #{tpu_custom_call.1} parent=0
    _
  %s4 = ssub.s32 1, %s2
  %s5 = scalar_select 0, %s4, %s2
  $region1: #{tpu_custom_call.1} parent=0
    #allocation3 [shape = 'u8[8192]{0}', space=vmem, size = 0x2000, scoped, tag = 'input window, operand 0, single buffered']
    #allocation4 [shape = 's32[2]{0}', space=sflag, size = 0x8, scoped, tag = 'scoped memory for tpu_custom_call.1']
    #allocation5 [shape = 's32[2]{0}', space=sflag, size = 0x8, scoped, tag = 'scoped memory for tpu_custom_call.1']
    #allocation6 [shape = 'u8[512]{0}', space=vmem, size = 0x400, scoped, tag = 'output window, operand 0, single buffered']
    %6 = vsyncpa [#allocation4], 0
    %7 = vsyncpa [#allocation5], 0
    loop: start=0, step=1, limit=4
    $region2: #{tpu_custom_call.1} parent=1 // loop_pre_header
      _
    $region3: #{tpu_custom_call.1} parent=1 // loop_header
      %s9 = sphi 0, %s13
      %p10 = scmp.ge.s32.totalorder %s9, 4
      %s17 = sphi 0, %s17
      %s19 = sphi 0, %s17
      %s20 = sphi 0, %s19
      %s34 = sphi 0, %s20
      %s38 = sphi 0, %s38
      %s40 = sphi 0, %s38
      %s41 = sphi 0, %s40
      %s55 = sphi 0, %s41
    $region4: #{tpu_custom_call.1} parent=1 // loop_header_branch
      %12 = sbr.rel (%p10) target = $region8
    $region5: #{tpu_custom_call.1} parent=1 // loop_body
      %s14 = ssub.s32 %s9, 1
      %s15 = ssub.s32 %s9, 2
      %s16 = sadd.s32 %s9, 1
      %s18 = sadd.s32 %s17, 1
      %p21 = scmp.eq.s32.totalorder %s9, 1
      %p22 = scmp.ne.s32.totalorder %s17, %s19
      %p23 = scmp.eq.s32.totalorder %s9, 0
      %p24 = por %p22, %p23
      %p25 = scmp.ne.s32.totalorder %s17, %s19
      %p26 = scmp.eq.s32.totalorder %s14, 1
      %p27 = por %p25, %p26
      %p28 = scmp.ne.s32.totalorder %s19, %s20
      %p29 = scmp.eq.s32.totalorder %s14, 0
      %p30 = por %p28, %p29
      %p31 = scmp.ne.s32.totalorder %s19, %s20
      %p32 = scmp.eq.s32.totalorder %s15, 1
      %p33 = por %p31, %p32
      %p35 = scmp.ne.s32.totalorder %s20, %s34
      %p36 = scmp.eq.s32.totalorder %s15, 0
      %p37 = por %p35, %p36
      %s39 = sadd.s32 %s38, 1
      %p42 = scmp.eq.s32.totalorder %s9, 1
      %p43 = scmp.ne.s32.totalorder %s38, %s40
      %p44 = scmp.eq.s32.totalorder %s9, 0
      %p45 = por %p43, %p44
      %p46 = scmp.ne.s32.totalorder %s38, %s40
      %p47 = scmp.eq.s32.totalorder %s14, 1
      %p48 = por %p46, %p47
      %p49 = scmp.ne.s32.totalorder %s40, %s41
      %p50 = scmp.eq.s32.totalorder %s14, 0
      %p51 = por %p49, %p50
      %p52 = scmp.ne.s32.totalorder %s40, %s41
      %p53 = scmp.eq.s32.totalorder %s15, 1
      %p54 = por %p52, %p53
      %p56 = scmp.ne.s32.totalorder %s41, %s55
      %p57 = scmp.eq.s32.totalorder %s15, 0
      %p58 = por %p56, %p57
      %p59 = scmp.le.s32.totalorder 1, %s9
      %p60 = scmp.lt.s32.totalorder %s9, 3
      %p61 = pnand %p59, %p60
      %p62 = pneg %p61
      // Predicated region
      $region9: #{tpu_custom_call.1} parent=5 // pred_check
        _
      $region10: #{tpu_custom_call.1} parent=5 // pred_check_branch
        %64 = sbr.rel (%p61) target = $region12
      $region11: #{tpu_custom_call.1} parent=5 // pred_region
        %s65 = ssub.s32 %s9, 1
        // Predicated region
        $region13: #{tpu_custom_call.1} parent=11 // pred_check
          %p66 = pneg %p30
        $region14: #{tpu_custom_call.1} parent=11 // pred_check_branch
          %68 = sbr.rel (%p66) target = $region16
        $region15: #{tpu_custom_call.1} parent=11 // pred_region
          %s70 = ssub.s32 256, 256
          %71 = vsyncadd [#allocation4], %s70
          %s72 = sshll.u32 [#allocation3], 4
          %s73 = int_to_ptr.vmem [resolvable:$true] %s72
          %78 = dma.hbm_to_vmem [thread:$0]  %s0, 256, %s73, [#allocation4], 128, 128, 8
        $region16: #{tpu_custom_call.1} parent=11 // pred_fallthru
          _
      $region12: #{tpu_custom_call.1} parent=5 // pred_fallthru
        _
      %p79 = scmp.lt.s32.totalorder %s9, 2
      // Predicated region
      $region17: #{tpu_custom_call.1} parent=5 // pred_check
        %p80 = pneg %p79
      $region18: #{tpu_custom_call.1} parent=5 // pred_check_branch
        %82 = sbr.rel (%p80) target = $region20
      $region19: #{tpu_custom_call.1} parent=5 // pred_region
        _
      $region20: #{tpu_custom_call.1} parent=5 // pred_fallthru
        _
      %p83 = scmp.le.s32.totalorder 1, %s9
      %p84 = scmp.lt.s32.totalorder %s9, 3
      %p85 = pnand %p83, %p84
      %p86 = pneg %p85
      // Predicated region
      $region21: #{tpu_custom_call.1} parent=5 // pred_check
        _
      $region22: #{tpu_custom_call.1} parent=5 // pred_check_branch
        %88 = sbr.rel (%p85) target = $region24
      $region23: #{tpu_custom_call.1} parent=5 // pred_region
        %s89 = ssub.s32 %s9, 1
        // Predicated region
        $region25: #{tpu_custom_call.1} parent=23 // pred_check
          %p90 = pneg %p30
        $region26: #{tpu_custom_call.1} parent=23 // pred_check_branch
          %92 = sbr.rel (%p90) target = $region28
        $region27: #{tpu_custom_call.1} parent=23 // pred_region
          %93 = dma.done [#allocation4], 256
        $region28: #{tpu_custom_call.1} parent=23 // pred_fallthru
          _
        %p94 = pneg %p30
        %p95 = pneg %p27
        %p96 = pneg %p51
        %p97 = pneg %p48
        %p98 = scmp.eq.s32.totalorder %s14, 0
        // Predicated region
        $region29: #{tpu_custom_call.1} parent=23 // pred_check
          %p99 = pneg %p98
        $region30: #{tpu_custom_call.1} parent=23 // pred_check_branch
          %101 = sbr.rel (%p99) target = $region32
        $region31: #{tpu_custom_call.1} parent=23 // pred_region
          %vm102 = vcmask 7168
          %103 = vst.msk [vmem:[#allocation2] sm:$0xff] %vm102, 0.0
        $region32: #{tpu_custom_call.1} parent=23 // pred_fallthru
          _
        %s104 = smul.u32 %s14, 8
        %s105 = scalar_lea.vmem [#allocation3], %s104
        %v106 = vld [vmem:[%s105] sm:$0xff]
        %v107 = vmul.f32 %v106, 2.0
        %s108 = sadd.s32 %s14, 1
        %p109 = scmp.ge.s32.totalorder %s108, 2
        %s110 = sadd.s32 %s14, 4294967295
        %s111 = scalar_select %p109, %s110, %s108
        %s112 = smul.u32 %s111, 8
        %s113 = scalar_lea.vmem [#allocation3], %s112
        %v114 = vld [vmem:[%s113] sm:$0xff]
        %v115 = vld [vmem:[#allocation3] sm:$0xff]
        %v116 = vld [vmem:[#allocation3 + $0x8] sm:$0xff]
        %117 = vmatprep.subr.mxu0 0.0
        %118 = vmatpush1.xpose.msra.mxu0 0.0
        %119 = vmatprep.subr.mxu0 0.0
        %120 = vmatpush1.xpose.msra.mxu0 0.0
        %121 = vmatprep.subr.mxu0 0.0
        %122 = vmatpush1.xpose.msra.mxu0 0.0
        %123 = vmatprep.subr.mxu0 0.0
        %124 = vmatpush1.xpose.msra.mxu0 0.0
        %125 = vmatprep.subr.mxu0 0.0
        %126 = vmatpush1.xpose.msra.mxu0 0.0
        %127 = vmatprep.subr.mxu0 0.0
        %128 = vmatpush1.xpose.msra.mxu0 0.0
        %129 = vmatprep.subr.mxu0 0.0
        %130 = vmatpush1.xpose.msra.mxu0 0.0
        %131 = vmatprep.subr.mxu0 0.0
        %132 = vmatpush1.xpose.msra.mxu0 0.0
        %133 = vmatprep.subr.mxu0 0.0
        %134 = vmatpush1.xpose.msra.mxu0 0.0
        %135 = vmatprep.subr.mxu0 0.0
        %136 = vmatpush1.xpose.msra.mxu0 0.0
        %137 = vmatprep.subr.mxu0 0.0
        %138 = vmatpush1.xpose.msra.mxu0 0.0
        %139 = vmatprep.subr.mxu0 0.0
        %140 = vmatpush1.xpose.msra.mxu0 0.0
        %141 = vmatprep.subr.mxu0 0.0
        %142 = vmatpush1.xpose.msra.mxu0 0.0
        %143 = vmatprep.subr.mxu0 0.0
        %144 = vmatpush1.xpose.msra.mxu0 0.0
        %145 = vmatprep.subr.mxu0 0.0
        %146 = vmatpush1.xpose.msra.mxu0 %v116
        %147 = vmatprep.subr.mxu0 0.0
        %148 = vmatpush1.xpose.msra.mxu0 %v115
        %149 = vmatprep.subr.mxu0 0.0
        %150 = vmatpush2.xpose.msra.mxu0 0.0
        %151 = vmatprep.subr.mxu0 0.0
        %152 = vmatpush2.xpose.msra.mxu0 0.0
        %153 = vmatprep.subr.mxu0 0.0
        %154 = vmatpush2.xpose.msra.mxu0 0.0
        %155 = vmatprep.subr.mxu0 0.0
        %156 = vmatpush2.xpose.msra.mxu0 0.0
        %157 = vmatprep.subr.mxu0 0.0
        %158 = vmatpush2.xpose.msra.mxu0 0.0
        %159 = vmatprep.subr.mxu0 0.0
        %160 = vmatpush2.xpose.msra.mxu0 0.0
        %161 = vmatprep.subr.mxu0 0.0
        %162 = vmatpush2.xpose.msra.mxu0 0.0
        %163 = vmatprep.subr.mxu0 0.0
        %164 = vmatpush2.xpose.msra.mxu0 0.0
        %165 = vmatprep.subr.mxu0 0.0
        %166 = vmatpush2.xpose.msra.mxu0 0.0
        %167 = vmatprep.subr.mxu0 0.0
        %168 = vmatpush2.xpose.msra.mxu0 0.0
        %169 = vmatprep.subr.mxu0 0.0
        %170 = vmatpush2.xpose.msra.mxu0 0.0
        %171 = vmatprep.subr.mxu0 0.0
        %172 = vmatpush2.xpose.msra.mxu0 0.0
        %173 = vmatprep.subr.mxu0 0.0
        %174 = vmatpush2.xpose.msra.mxu0 0.0
        %175 = vmatprep.subr.mxu0 0.0
        %176 = vmatpush2.xpose.msra.mxu0 0.0
        %177 = vmatprep.subr.mxu0 0.0
        %178 = vmatpush2.xpose.msra.mxu0 0.0
        %179 = vmatprep.subr.mxu0 0.0
        %180 = vmatpush2.xpose.msra.mxu0 0.0
        %181 = vmatprep.mubr.f32.mxu0 0.0
        %182 = vmatmul.mubr.f32.gmra.mxu0 %v107
        %v183 = vpop.f32.mrf.mxu0
        %v184 = vadd.f32 0.0, %v183
        %v185 = vpop.f32.mrf.mxu0
        %186 = vdwg.mxu0
        %v187 = vlaneseq
        %v188 = vshrl.u32 %v187, 7
        %v189 = vstv %s104
        %v190 = vadd.s32 %v189, %v188
        %v191 = vlaneseq
        %v192 = vand.u32 %v191, 127
        %vm193 = vcmp.eq.s32.totalorder %v190, %v192
        %v194 = vsel %vm193, -1e+30, %v184
        %vm195 = vcmask 130048
        %v196 = vsel %vm195, %v194, -inf
        %197 = vmax.xlane.f32.xlu0 %v196
        %v198 = vpop.xlane.xlu0 %197
        %v199 = vsub.f32 %v194, %v198
        %v200 = vmul.f32 %v199, 1.442695
        %v201 = vpow.pop %v200
        %v202 = vsel %vm195, %v201, 0.0
        %203 = vadd.xlane.f32.xlu0 %v202
        %v204 = vpop.xlane.xlu0 %203
        %v205 = vlog2.pop %v204
        %v206 = vmul.f32 %v205, 0.6931472
        %v207 = vadd.f32 %v198, %v206
        %v208 = vmul.f32 %v107, %v114
        %209 = vadd.xlane.f32.xlu0 %v208
        %v210 = vpop.xlane.xlu0 %209
        %v211 = vld [vmem:[#allocation2] sm:$0xff]
        %v212 = vsub.f32 %v207, %v210
        %v213 = vadd.f32 %v211, %v212
        %vm214 = vcmask 7168
        %215 = vst.msk [vmem:[#allocation2] sm:$0xff] %vm214, %v213
        %p216 = scmp.eq.s32.totalorder %s14, 1
        // Predicated region
        $region33: #{tpu_custom_call.1} parent=23 // pred_check
          %p217 = pneg %p216
        $region34: #{tpu_custom_call.1} parent=23 // pred_check_branch
          %219 = sbr.rel (%p217) target = $region36
        $region35: #{tpu_custom_call.1} parent=23 // pred_region
          %v220 = vld [vmem:[#allocation2] sm:$0xff]
          %v221 = vsel %vm214, %v220, 0.0
          %v222 = vrot.slane %v221, 4
          %v223 = vadd.f32 %v221, %v222
          %v224 = vrot.slane %v223, 2
          %v225 = vadd.f32 %v223, %v224
          %v226 = vrot.slane %v225, 1
          %v227 = vadd.f32 %v225, %v226
          %v228 = vmul.f32 %v227, 0.0625
          %vm229 = vcmask 0
          %230 = vst.msk [vmem:[#allocation6] sm:$0x1] %vm229, %v228
        $region36: #{tpu_custom_call.1} parent=23 // pred_fallthru
          _
        // Predicated region
        $region37: #{tpu_custom_call.1} parent=23 // pred_check
          %p231 = pneg %p48
        $region38: #{tpu_custom_call.1} parent=23 // pred_check_branch
          %233 = sbr.rel (%p231) target = $region40
        $region39: #{tpu_custom_call.1} parent=23 // pred_region
          %s235 = ssub.s32 16, 16
          %236 = vsyncadd [#allocation5], %s235
          %s238 = sshll.u32 [#allocation6], 4
          %s239 = int_to_ptr.vmem [resolvable:$true] %s238
          %241 = dma.vmem_to_hbm [thread:$0]  %s239, 16, %s1, [#allocation5]
        $region40: #{tpu_custom_call.1} parent=23 // pred_fallthru
          _
        // Predicated region
        $region41: #{tpu_custom_call.1} parent=23 // pred_check
          %p242 = pneg %p48
        $region42: #{tpu_custom_call.1} parent=23 // pred_check_branch
          %244 = sbr.rel (%p242) target = $region44
        $region43: #{tpu_custom_call.1} parent=23 // pred_region
          %245 = dma.done [#allocation5], 16
        $region44: #{tpu_custom_call.1} parent=23 // pred_fallthru
          _
      $region24: #{tpu_custom_call.1} parent=5 // pred_fallthru
        _
      %p246 = scmp.le.s32.totalorder 2, %s9
      // Predicated region
      $region45: #{tpu_custom_call.1} parent=5 // pred_check
        %p247 = pneg %p246
      $region46: #{tpu_custom_call.1} parent=5 // pred_check_branch
        %249 = sbr.rel (%p247) target = $region48
      $region47: #{tpu_custom_call.1} parent=5 // pred_region
        %s250 = ssub.s32 %s9, 2
      $region48: #{tpu_custom_call.1} parent=5 // pred_fallthru
        _
    $region6: #{tpu_custom_call.1} parent=1 // loop_footer
      %s13 = sadd.s32 1, %s9
    $region7: #{tpu_custom_call.1} parent=1 // loop_footer_branch
      %8 = sbr.rel target = $region3
    $region8: #{tpu_custom_call.1} parent=1 // loop_exit
      _
    %251 = vsyncpa [#allocation4], 1
    %s252 = scalar_lea.sflag [#allocation4], 1
    %253 = vsyncpa %s252, 1
    %254 = vsyncpa [#allocation5], 1
    %s255 = scalar_lea.sflag [#allocation5], 1
    %256 = vsyncpa %s255, 1

</llo_original>
